<compile_context>
chip_gen: v7x
topology: tpu7x:2x2x1
jax: 0.10.0
libtpu: 0.0.40
codegen_flags: <defaults>
</compile_context>

<pallas_src>
import jax
import jax.numpy as jnp
from jax.experimental import pallas as pl
from jax.experimental.pallas import tpu as pltpu

LANE = 128  # TPU lane width; feature/hidden dims are padded to a multiple.


def _round_up(x, m):
    return ((x + m - 1) // m) * m


def _dnn_kernel(x_ref, w_ref, b_ref, out_ref):
    """3 residual units -> final row-dot -> sigmoid.

    x_ref  : (TB, P) f32    activation tile (batch on sublanes, features on lanes)
    w_ref  : (6, P, P)      rows 0..2 = W1 of blocks 0..2, rows 3..5 = W2
                            (f32 or bf16 -- MXU operands only)
    b_ref  : (8, P)  f32    rows 0..2 = b1, rows 3..5 = b2,
                            row 6 = final weight row wf, row 7 = bf (broadcast)
    out_ref: (TB, 1) f32    sigmoid(logit)
    """
    h = x_ref[...]
    for k in range(3):  # static unroll over the 3 residual blocks
        w1 = w_ref[k]
        w2 = w_ref[3 + k]
        b1 = b_ref[k]
        b2 = b_ref[3 + k]
        # MXU matmuls (optionally bf16 operands); elementwise path stays f32.
        z = jnp.dot(h.astype(w1.dtype), w1,
                    preferred_element_type=jnp.float32) + b1
        z = jnp.maximum(z, 0.0)
        z = jnp.dot(z.astype(w2.dtype), w2,
                    preferred_element_type=jnp.float32) + b2
        h = jnp.maximum(z + h, 0.0)

    # Final Linear(P, 1): VPU multiply + XLU cross-lane reduce instead of an
    # N=1 MXU matmul.  Result stays (TB, 1) -> minimal output writeback.
    wf = b_ref[6]                       # (P,)  final weight row (zero-padded)
    bf = b_ref[7:8, 0:1]                # (1,1) final bias
    logit = jnp.sum(h * wf, axis=-1, keepdims=True) + bf     # (TB, 1)
    # Sigmoid epilogue: exp and approx reciprocal both run on the EUP slot.
    out_ref[...] = pl.reciprocal(1.0 + jnp.exp(-logit), approx=True)


def _pack_params(dnn_params, pad_dim, use_bf16):
    """Zero-pad every layer to (pad_dim, pad_dim) and pack into two arrays."""
    p = list(dnn_params)
    assert len(p) == 14, "expected 3 residual blocks + final linear"
    w1_list, w2_list, b1_list, b2_list = [], [], [], []
    for k in range(3):
        w1, b1, w2, b2 = p[4 * k:4 * k + 4]
        w1_list.append(jnp.pad(w1, ((0, pad_dim - w1.shape[0]),
                                    (0, pad_dim - w1.shape[1]))))
        w2_list.append(jnp.pad(w2, ((0, pad_dim - w2.shape[0]),
                                    (0, pad_dim - w2.shape[1]))))
        b1_list.append(jnp.pad(b1.reshape(-1), (0, pad_dim - b1.size)))
        b2_list.append(jnp.pad(b2.reshape(-1), (0, pad_dim - b2.size)))
    wf, bf = p[12], p[13]
    wf_row = jnp.pad(wf.reshape(-1), (0, pad_dim - wf.size))
    bf_row = jnp.broadcast_to(bf.reshape(()), (pad_dim,))

    w_pack = jnp.stack(w1_list + w2_list, axis=0).astype(
        jnp.bfloat16 if use_bf16 else jnp.float32)           # (6, P, P)
    b_pack = jnp.stack(b1_list + b2_list + [wf_row, bf_row],
                       axis=0).astype(jnp.float32)            # (8, P)
    return w_pack, b_pack


def deep_crossing_dnn(inputs, dnn_params, *, tile_b=256, use_bf16=False):
    """Residual DNN + final sigmoid in one batch-tiled Pallas call."""
    B, d_in = inputs.shape
    in_dims = dnn_params[0].shape[0]
    hidden_dims = [dnn_params[4 * k].shape[1] for k in range(3)]
    P = _round_up(max([in_dims] + hidden_dims), LANE)
    assert d_in <= P
    w_pack, b_pack = _pack_params(dnn_params, P, use_bf16)

    x = inputs.astype(jnp.float32)
    if d_in < P:  # only taken when the caller did not pre-pad the lanes
        x = jnp.pad(x, ((0, 0), (0, P - d_in)))

    tile_b = max(8, tile_b - tile_b % 8)
    tile_b = min(tile_b, _round_up(B, 8))     # don't exceed the (padded) batch
    grid = (pl.cdiv(B, tile_b),)              # partial last block handled by Pallas

    out = pl.pallas_call(
        _dnn_kernel,
        grid=grid,
        in_specs=[
            pl.BlockSpec((tile_b, P), lambda i: (i, 0)),       # activation tile
            pl.BlockSpec(w_pack.shape, lambda i: (0, 0, 0)),   # VMEM-resident
            pl.BlockSpec(b_pack.shape, lambda i: (0, 0)),      # VMEM-resident
        ],
        out_specs=pl.BlockSpec((tile_b, 1), lambda i: (i, 0)),
        out_shape=jax.ShapeDtypeStruct((B, 1), jnp.float32),
        compiler_params=pltpu.CompilerParams(
            dimension_semantics=("parallel",),  # shard batch tiles over TCs (v7x)
        ),
    )(x, w_pack, b_pack)
    return out


def deep_crossing_forward(X, emb_tables, dnn_params, dis_fea_num,
                          *, tile_b=256, use_bf16=False):
    """Full DeepCrossing forward: embedding lookup (glue) + Pallas DNN kernel."""
    # TODO(synk): fuse the embedding gather + concat into the same pallas_call
    # (scalar-prefetched id columns + in-kernel gather/DMA) to avoid one HBM
    # round-trip of the [B, input_dims] activation.
    B = X.shape[0]
    embeds = [tbl[X[:, i].astype(jnp.int32)] for i, tbl in enumerate(emb_tables)]
    cont = X[:, dis_fea_num:].astype(jnp.float32)

    in_dims = dnn_params[0].shape[0]
    hidden_dims = [dnn_params[4 * k].shape[1] for k in range(3)]
    P = _round_up(max([in_dims] + hidden_dims), LANE)

    pieces = embeds + [cont]
    if P > in_dims:  # fold the 128-lane zero pad into the concat (single pass)
        pieces.append(jnp.zeros((B, P - in_dims), jnp.float32))
    inputs = jnp.concatenate(pieces, axis=1)                   # (B, P)
    return deep_crossing_dnn(inputs, dnn_params, tile_b=tile_b, use_bf16=use_bf16)


def init_params(key, dis_feafield_size, feature_num, dis_fea_num,
                dnn_hidden_unit=(32, 32), embedding_size=32):
    """Deterministic synthetic parameter init matching the module's shapes."""
    conti_fea_num = feature_num - dis_fea_num
    input_dims = dis_fea_num * embedding_size + conti_fea_num
    keys = iter(jax.random.split(key, 64))

    emb_tables = [
        0.1 * jax.random.normal(next(keys), (s, embedding_size), jnp.float32)
        for s in dis_feafield_size
    ]

    hidden_units = [input_dims] + list(dnn_hidden_unit)
    dnn_params = []
    for h in hidden_units:  # 3 residual blocks: ResidualBlock(input_dims, h)
        s1 = 1.0 / jnp.sqrt(jnp.float32(input_dims))
        s2 = 1.0 / jnp.sqrt(jnp.float32(h))
        w1 = s1 * jax.random.normal(next(keys), (input_dims, h), jnp.float32)
        b1 = s1 * jax.random.normal(next(keys), (1, h), jnp.float32)
        w2 = s2 * jax.random.normal(next(keys), (h, input_dims), jnp.float32)
        b2 = s2 * jax.random.normal(next(keys), (1, input_dims), jnp.float32)
        dnn_params += [w1, b1, w2, b2]

    sf = 1.0 / jnp.sqrt(jnp.float32(input_dims))
    wf = sf * jax.random.normal(next(keys), (input_dims, 1), jnp.float32)
    bf = sf * jax.random.normal(next(keys), (1, 1), jnp.float32)
    dnn_params += [wf, bf]
    return emb_tables, dnn_params, input_dims


def _reference_forward(X, emb_tables, dnn_params, dis_fea_num):
    """Pure-JAX reference for correctness checking."""
    embeds = [tbl[X[:, i].astype(jnp.int32)] for i, tbl in enumerate(emb_tables)]
    h = jnp.concatenate(embeds + [X[:, dis_fea_num:]], axis=1)
    p = list(dnn_params)
    for k in range(3):
        w1, b1, w2, b2 = p[4 * k:4 * k + 4]
        z = jnp.maximum(h @ w1 + b1, 0.0)
        z = z @ w2 + b2
        h = jnp.maximum(z + h, 0.0)
    wf, bf = p[12], p[13]
    return jax.nn.sigmoid(h @ wf + bf)


if __name__ == "__main__":
    key = jax.random.PRNGKey(0)

    # Small, forward-consistent config:
    dis_feafield_size = [11, 13, 17]   # 3 categorical vocab sizes
    feature_num = 7                    # total features per row
    dis_fea_num = 3                    # first 3 columns are categorical ids
    embedding_size = 32

    kp, kid, kcont = jax.random.split(key, 3)
    emb_tables, dnn_params, input_dims = init_params(
        kp, dis_feafield_size, feature_num, dis_fea_num,
        dnn_hidden_unit=(32, 32), embedding_size=embedding_size)

    def make_X(batch, kid_, kcont_):
        id_cols = jnp.stack(
            [jax.random.randint(jax.random.fold_in(kid_, i), (batch,), 0, s)
             for i, s in enumerate(dis_feafield_size)], axis=1).astype(jnp.float32)
        cont_cols = jax.random.normal(
            kcont_, (batch, feature_num - dis_fea_num), jnp.float32)
        return jnp.concatenate([id_cols, cont_cols], axis=1)

    fwd = jax.jit(deep_crossing_forward,
                  static_argnames=("dis_fea_num", "tile_b", "use_bf16"))

    # --- small batch, f32 MXU path (single tile) -----------------------------
    X_small = make_X(8, kid, kcont)
    out = jax.block_until_ready(
        fwd(X_small, emb_tables, dnn_params, dis_fea_num=dis_fea_num))
    ref = _reference_forward(X_small, emb_tables, dnn_params, dis_fea_num)
    assert out.shape == (8, 1)
    # tolerance covers the EUP approx-reciprocal in the in-kernel sigmoid
    assert jnp.allclose(out, ref, atol=1e-2, rtol=1e-2), \
        float(jnp.max(jnp.abs(out - ref)))

    # --- larger batch, bf16 MXU operands, multi-tile parallel grid ----------
    X_big = make_X(512, jax.random.fold_in(kid, 99), jax.random.fold_in(kcont, 99))
    out_big = jax.block_until_ready(
        fwd(X_big, emb_tables, dnn_params, dis_fea_num=dis_fea_num,
            use_bf16=True))
    ref_big = _reference_forward(X_big, emb_tables, dnn_params, dis_fea_num)
    assert out_big.shape == (512, 1)
    assert jnp.allclose(out_big, ref_big, atol=5e-2, rtol=5e-2), \
        float(jnp.max(jnp.abs(out_big - ref_big)))

    print("KERNEL_OK")
</pallas_src>

<mosaic_0001>
module attributes {stable_mosaic.version = 11 : i64} {
  func.func @_dnn_kernel(%arg0: i32, %arg1: memref<8x128xf32, #tpu.memory_space<vmem>>, %arg2: memref<6x128x128xf32, #tpu.memory_space<vmem>>, %arg3: memref<8x128xf32, #tpu.memory_space<vmem>>, %arg4: memref<8x1xf32, #tpu.memory_space<vmem>>) attributes {dimension_semantics = [#tpu.dimension_semantics<parallel>], iteration_bounds = array<i64: 1>, scalar_prefetch = 0 : i64, scratch_operands = 0 : i64, tpu.core_type = #tpu.core_type<tc>, window_params = [{transform_indices = @transform_0, window_bounds = array<i64: 8, 128>}, {pipeline_mode = #tpu.pipeline_mode<synchronous>, transform_indices = @transform_1, window_bounds = array<i64: 6, 128, 128>}, {pipeline_mode = #tpu.pipeline_mode<synchronous>, transform_indices = @transform_2, window_bounds = array<i64: 8, 128>}, {transform_indices = @transform_3, window_bounds = array<i64: 8, 1>}]} {
    %c0 = arith.constant 0 : index
    %c0_0 = arith.constant 0 : index
    %0 = vector.load %arg1[%c0, %c0_0] : memref<8x128xf32, #tpu.memory_space<vmem>>, vector<8x128xf32>
    %c0_1 = arith.constant 0 : index
    %c0_2 = arith.constant 0 : index
    %c0_3 = arith.constant 0 : index
    %1 = vector.load %arg2[%c0_1, %c0_2, %c0_3] : memref<6x128x128xf32, #tpu.memory_space<vmem>>, vector<1x128x128xf32>
    %2 = vector.shape_cast %1 : vector<1x128x128xf32> to vector<128x128xf32>
    %c3 = arith.constant 3 : index
    %c0_4 = arith.constant 0 : index
    %c0_5 = arith.constant 0 : index
    %3 = vector.load %arg2[%c3, %c0_4, %c0_5] : memref<6x128x128xf32, #tpu.memory_space<vmem>>, vector<1x128x128xf32>
    %4 = vector.shape_cast %3 : vector<1x128x128xf32> to vector<128x128xf32>
    %c0_6 = arith.constant 0 : index
    %c0_7 = arith.constant 0 : index
    %5 = vector.load %arg3[%c0_6, %c0_7] : memref<8x128xf32, #tpu.memory_space<vmem>>, vector<1x128xf32>
    %6 = vector.shape_cast %5 : vector<1x128xf32> to vector<128xf32>
    %c3_8 = arith.constant 3 : index
    %c0_9 = arith.constant 0 : index
    %7 = vector.load %arg3[%c3_8, %c0_9] : memref<8x128xf32, #tpu.memory_space<vmem>>, vector<1x128xf32>
    %8 = vector.shape_cast %7 : vector<1x128xf32> to vector<128xf32>
    %cst = arith.constant dense<0.000000e+00> : vector<8x128xf32>
    %9 = tpu.matmul %0, %2, %cst {dimension_numbers = #tpu.dot_dimension_numbers<[1], [0], [0], [1], [0, 0, 1, 1], [], []>} : vector<8x128xf32>, vector<128x128xf32>, vector<8x128xf32> -> vector<8x128xf32>
    %10 = vector.shape_cast %6 : vector<128xf32> to vector<1x128xf32>
    %11 = vector.broadcast %10 : vector<1x128xf32> to vector<8x128xf32>
    %12 = arith.addf %9, %11 : vector<8x128xf32>
    %cst_10 = arith.constant 0.000000e+00 : f32
    %13 = vector.broadcast %cst_10 : f32 to vector<8x128xf32>
    %14 = arith.maximumf %12, %13 : vector<8x128xf32>
    %cst_11 = arith.constant dense<0.000000e+00> : vector<8x128xf32>
    %15 = tpu.matmul %14, %4, %cst_11 {dimension_numbers = #tpu.dot_dimension_numbers<[1], [0], [0], [1], [0, 0, 1, 1], [], []>} : vector<8x128xf32>, vector<128x128xf32>, vector<8x128xf32> -> vector<8x128xf32>
    %16 = vector.shape_cast %8 : vector<128xf32> to vector<1x128xf32>
    %17 = vector.broadcast %16 : vector<1x128xf32> to vector<8x128xf32>
    %18 = arith.addf %15, %17 : vector<8x128xf32>
    %19 = arith.addf %18, %0 : vector<8x128xf32>
    %cst_12 = arith.constant 0.000000e+00 : f32
    %20 = vector.broadcast %cst_12 : f32 to vector<8x128xf32>
    %21 = arith.maximumf %19, %20 : vector<8x128xf32>
    %c1 = arith.constant 1 : index
    %c0_13 = arith.constant 0 : index
    %c0_14 = arith.constant 0 : index
    %22 = vector.load %arg2[%c1, %c0_13, %c0_14] : memref<6x128x128xf32, #tpu.memory_space<vmem>>, vector<1x128x128xf32>
    %23 = vector.shape_cast %22 : vector<1x128x128xf32> to vector<128x128xf32>
    %c4 = arith.constant 4 : index
    %c0_15 = arith.constant 0 : index
    %c0_16 = arith.constant 0 : index
    %24 = vector.load %arg2[%c4, %c0_15, %c0_16] : memref<6x128x128xf32, #tpu.memory_space<vmem>>, vector<1x128x128xf32>
    %25 = vector.shape_cast %24 : vector<1x128x128xf32> to vector<128x128xf32>
    %c1_17 = arith.constant 1 : index
    %c0_18 = arith.constant 0 : index
    %26 = vector.load %arg3[%c1_17, %c0_18] : memref<8x128xf32, #tpu.memory_space<vmem>>, vector<1x128xf32>
    %27 = vector.shape_cast %26 : vector<1x128xf32> to vector<128xf32>
    %c4_19 = arith.constant 4 : index
    %c0_20 = arith.constant 0 : index
    %28 = vector.load %arg3[%c4_19, %c0_20] : memref<8x128xf32, #tpu.memory_space<vmem>>, vector<1x128xf32>
    %29 = vector.shape_cast %28 : vector<1x128xf32> to vector<128xf32>
    %cst_21 = arith.constant dense<0.000000e+00> : vector<8x128xf32>
    %30 = tpu.matmul %21, %23, %cst_21 {dimension_numbers = #tpu.dot_dimension_numbers<[1], [0], [0], [1], [0, 0, 1, 1], [], []>} : vector<8x128xf32>, vector<128x128xf32>, vector<8x128xf32> -> vector<8x128xf32>
    %31 = vector.shape_cast %27 : vector<128xf32> to vector<1x128xf32>
    %32 = vector.broadcast %31 : vector<1x128xf32> to vector<8x128xf32>
    %33 = arith.addf %30, %32 : vector<8x128xf32>
    %cst_22 = arith.constant 0.000000e+00 : f32
    %34 = vector.broadcast %cst_22 : f32 to vector<8x128xf32>
    %35 = arith.maximumf %33, %34 : vector<8x128xf32>
    %cst_23 = arith.constant dense<0.000000e+00> : vector<8x128xf32>
    %36 = tpu.matmul %35, %25, %cst_23 {dimension_numbers = #tpu.dot_dimension_numbers<[1], [0], [0], [1], [0, 0, 1, 1], [], []>} : vector<8x128xf32>, vector<128x128xf32>, vector<8x128xf32> -> vector<8x128xf32>
    %37 = vector.shape_cast %29 : vector<128xf32> to vector<1x128xf32>
    %38 = vector.broadcast %37 : vector<1x128xf32> to vector<8x128xf32>
    %39 = arith.addf %36, %38 : vector<8x128xf32>
    %40 = arith.addf %39, %21 : vector<8x128xf32>
    %cst_24 = arith.constant 0.000000e+00 : f32
    %41 = vector.broadcast %cst_24 : f32 to vector<8x128xf32>
    %42 = arith.maximumf %40, %41 : vector<8x128xf32>
    %c2 = arith.constant 2 : index
    %c0_25 = arith.constant 0 : index
    %c0_26 = arith.constant 0 : index
    %43 = vector.load %arg2[%c2, %c0_25, %c0_26] : memref<6x128x128xf32, #tpu.memory_space<vmem>>, vector<1x128x128xf32>
    %44 = vector.shape_cast %43 : vector<1x128x128xf32> to vector<128x128xf32>
    %c5 = arith.constant 5 : index
    %c0_27 = arith.constant 0 : index
    %c0_28 = arith.constant 0 : index
    %45 = vector.load %arg2[%c5, %c0_27, %c0_28] : memref<6x128x128xf32, #tpu.memory_space<vmem>>, vector<1x128x128xf32>
    %46 = vector.shape_cast %45 : vector<1x128x128xf32> to vector<128x128xf32>
    %c2_29 = arith.constant 2 : index
    %c0_30 = arith.constant 0 : index
    %47 = vector.load %arg3[%c2_29, %c0_30] : memref<8x128xf32, #tpu.memory_space<vmem>>, vector<1x128xf32>
    %48 = vector.shape_cast %47 : vector<1x128xf32> to vector<128xf32>
    %c5_31 = arith.constant 5 : index
    %c0_32 = arith.constant 0 : index
    %49 = vector.load %arg3[%c5_31, %c0_32] : memref<8x128xf32, #tpu.memory_space<vmem>>, vector<1x128xf32>
    %50 = vector.shape_cast %49 : vector<1x128xf32> to vector<128xf32>
    %cst_33 = arith.constant dense<0.000000e+00> : vector<8x128xf32>
    %51 = tpu.matmul %42, %44, %cst_33 {dimension_numbers = #tpu.dot_dimension_numbers<[1], [0], [0], [1], [0, 0, 1, 1], [], []>} : vector<8x128xf32>, vector<128x128xf32>, vector<8x128xf32> -> vector<8x128xf32>
    %52 = vector.shape_cast %48 : vector<128xf32> to vector<1x128xf32>
    %53 = vector.broadcast %52 : vector<1x128xf32> to vector<8x128xf32>
    %54 = arith.addf %51, %53 : vector<8x128xf32>
    %cst_34 = arith.constant 0.000000e+00 : f32
    %55 = vector.broadcast %cst_34 : f32 to vector<8x128xf32>
    %56 = arith.maximumf %54, %55 : vector<8x128xf32>
    %cst_35 = arith.constant dense<0.000000e+00> : vector<8x128xf32>
    %57 = tpu.matmul %56, %46, %cst_35 {dimension_numbers = #tpu.dot_dimension_numbers<[1], [0], [0], [1], [0, 0, 1, 1], [], []>} : vector<8x128xf32>, vector<128x128xf32>, vector<8x128xf32> -> vector<8x128xf32>
    %58 = vector.shape_cast %50 : vector<128xf32> to vector<1x128xf32>
    %59 = vector.broadcast %58 : vector<1x128xf32> to vector<8x128xf32>
    %60 = arith.addf %57, %59 : vector<8x128xf32>
    %61 = arith.addf %60, %42 : vector<8x128xf32>
    %cst_36 = arith.constant 0.000000e+00 : f32
    %62 = vector.broadcast %cst_36 : f32 to vector<8x128xf32>
    %63 = arith.maximumf %61, %62 : vector<8x128xf32>
    %c6 = arith.constant 6 : index
    %c0_37 = arith.constant 0 : index
    %64 = vector.load %arg3[%c6, %c0_37] : memref<8x128xf32, #tpu.memory_space<vmem>>, vector<1x128xf32>
    %65 = vector.shape_cast %64 : vector<1x128xf32> to vector<128xf32>
    %c7 = arith.constant 7 : index
    %c0_38 = arith.constant 0 : index
    %66 = vector.load %arg3[%c7, %c0_38] : memref<8x128xf32, #tpu.memory_space<vmem>>, vector<1x1xf32>
    %67 = vector.shape_cast %65 : vector<128xf32> to vector<1x128xf32>
    %68 = vector.broadcast %67 : vector<1x128xf32> to vector<8x128xf32>
    %69 = arith.mulf %63, %68 : vector<8x128xf32>
    %cst_39 = arith.constant dense<0.000000e+00> : vector<8xf32>
    %70 = vector.multi_reduction <add>, %69, %cst_39 [1] : vector<8x128xf32> to vector<8xf32>
    %71 = vector.shape_cast %70 : vector<8xf32> to vector<8x1xf32>
    %72 = vector.broadcast %66 : vector<1x1xf32> to vector<8x1xf32>
    %73 = arith.addf %71, %72 : vector<8x1xf32>
    %cst_40 = arith.constant 0.000000e+00 : f32
    %74 = vector.broadcast %cst_40 : f32 to vector<8x1xf32>
    %75 = arith.subf %74, %73 : vector<8x1xf32>
    %76 = math.exp %75 : vector<8x1xf32>
    %cst_41 = arith.constant 1.000000e+00 : f32
    %77 = vector.broadcast %cst_41 : f32 to vector<8x1xf32>
    %78 = arith.addf %77, %76 : vector<8x1xf32>
    %79 = tpu.reciprocal %78 {approx = true} : vector<8x1xf32> -> vector<8x1xf32>
    %c0_42 = arith.constant 0 : index
    %c0_43 = arith.constant 0 : index
    %80 = vector.load %arg4[%c0_42, %c0_43] : memref<8x1xf32, #tpu.memory_space<vmem>>, vector<8x1xf32>
    tpu.vector_store %arg4[%c0_42, %c0_43], %79 {strides = array<i32>} : memref<8x1xf32, #tpu.memory_space<vmem>>, vector<8x1xf32>,
    return
  }
  func.func @transform_0(%arg0: i32) -> (i32, i32) {
    %c0_i32 = arith.constant 0 : i32
    %c0_i32_0 = arith.constant 0 : i32
    return %arg0, %c0_i32 : i32, i32
  }
  func.func @transform_1(%arg0: i32) -> (i32, i32, i32) {
    %c0_i32 = arith.constant 0 : i32
    %c0_i32_0 = arith.constant 0 : i32
    %c0_i32_1 = arith.constant 0 : i32
    %c0_i32_2 = arith.constant 0 : i32
    return %c0_i32, %c0_i32_0, %c0_i32_1 : i32, i32, i32
  }
  func.func @transform_2(%arg0: i32) -> (i32, i32) {
    %c0_i32 = arith.constant 0 : i32
    %c0_i32_0 = arith.constant 0 : i32
    %c0_i32_1 = arith.constant 0 : i32
    return %c0_i32, %c0_i32_0 : i32, i32
  }
  func.func @transform_3(%arg0: i32) -> (i32, i32) {
    %c0_i32 = arith.constant 0 : i32
    %c0_i32_0 = arith.constant 0 : i32
    return %arg0, %c0_i32 : i32, i32
  }
}

</mosaic_0001>

<llo_original>
// kernel: deep_crossing_forward.1
$region0: #{deep_crossing_forward.1}
  #allocation0 [shape = 'u32[]', space=smem, size = 0x4, offset = 0x4, fixed_abs, tag = 'smem constant byte address 0x4 - core index']
  #allocation1 [shape = 'u32[144,128]{1,0:T(1,128)}', space=vmem, size = 0x12000, scoped, tag = 'internal scratch']
  %s0 = inlined_call_operand.vmem [shape: f32[8,128], index: 0, kind: input, shape index: {}]
  %s1 = inlined_call_operand.vmem [shape: f32[6,128,128], index: 1, kind: input, shape index: {}]
  %s2 = inlined_call_operand.vmem [shape: f32[8,128], index: 2, kind: input, shape index: {}]
  %s3 = inlined_call_operand.vmem [shape: f32[8,1], index: 3, kind: output, shape index: {}]
  %s4 = sld [smem:[#allocation0]]
  $region22: #{deep_crossing_forward.1} parent=0
    _
  %s6 = ssub.s32 1, %s4
  %s7 = scalar_select 0, %s6, %s4
  // Predicated region
  $region2: #{deep_crossing_forward.1} parent=0 // pred_check
    _
  $region3: #{deep_crossing_forward.1} parent=0 // pred_check_branch
    %9 = sbr.rel (0) target = $region5
  $region4: #{deep_crossing_forward.1} parent=0 // pred_region
    _
  $region5: #{deep_crossing_forward.1} parent=0 // pred_fallthru
    _
  // Predicated region
  $region6: #{deep_crossing_forward.1} parent=0 // pred_check
    _
  $region7: #{deep_crossing_forward.1} parent=0 // pred_check_branch
    %11 = sbr.rel (0) target = $region9
  $region8: #{deep_crossing_forward.1} parent=0 // pred_region
    _
  $region9: #{deep_crossing_forward.1} parent=0 // pred_fallthru
    _
  // Predicated region
  $region10: #{deep_crossing_forward.1} parent=0 // pred_check
    _
  $region11: #{deep_crossing_forward.1} parent=0 // pred_check_branch
    %13 = sbr.rel (0) target = $region13
  $region12: #{deep_crossing_forward.1} parent=0 // pred_region
    _
  $region13: #{deep_crossing_forward.1} parent=0 // pred_fallthru
    _
  %v14 = vld [vmem:[%s0] sm:$0xff]
  %v15 = vld [vmem:[%s1] sm:$0xff]
  %v16 = vld [vmem:[%s1 + $0x8] sm:$0xff]
  %v17 = vld [vmem:[%s1 + $0x10] sm:$0xff]
  %v18 = vld [vmem:[%s1 + $0x18] sm:$0xff]
  %v19 = vld [vmem:[%s1 + $0x20] sm:$0xff]
  %v20 = vld [vmem:[%s1 + $0x28] sm:$0xff]
  %v21 = vld [vmem:[%s1 + $0x30] sm:$0xff]
  %v22 = vld [vmem:[%s1 + $0x38] sm:$0xff]
  %v23 = vld [vmem:[%s1 + $0x40] sm:$0xff]
  %v24 = vld [vmem:[%s1 + $0x48] sm:$0xff]
  %v25 = vld [vmem:[%s1 + $0x50] sm:$0xff]
  %v26 = vld [vmem:[%s1 + $0x58] sm:$0xff]
  %v27 = vld [vmem:[%s1 + $0x60] sm:$0xff]
  %v28 = vld [vmem:[%s1 + $0x68] sm:$0xff]
  %v29 = vld [vmem:[%s1 + $0x70] sm:$0xff]
  %v30 = vld [vmem:[%s1 + $0x78] sm:$0xff]
  %s31 = scalar_lea.vmem %s1, 384
  %v32 = vld [vmem:[%s31] sm:$0xff]
  %v33 = vld [vmem:[%s31 + $0x8] sm:$0xff]
  %v34 = vld [vmem:[%s31 + $0x10] sm:$0xff]
  %v35 = vld [vmem:[%s31 + $0x18] sm:$0xff]
  %v36 = vld [vmem:[%s31 + $0x20] sm:$0xff]
  %v37 = vld [vmem:[%s31 + $0x28] sm:$0xff]
  %v38 = vld [vmem:[%s31 + $0x30] sm:$0xff]
  %v39 = vld [vmem:[%s31 + $0x38] sm:$0xff]
  %v40 = vld [vmem:[%s31 + $0x40] sm:$0xff]
  %v41 = vld [vmem:[%s31 + $0x48] sm:$0xff]
  %v42 = vld [vmem:[%s31 + $0x50] sm:$0xff]
  %v43 = vld [vmem:[%s31 + $0x58] sm:$0xff]
  %v44 = vld [vmem:[%s31 + $0x60] sm:$0xff]
  %v45 = vld [vmem:[%s31 + $0x68] sm:$0xff]
  %v46 = vld [vmem:[%s31 + $0x70] sm:$0xff]
  %v47 = vld [vmem:[%s31 + $0x78] sm:$0xff]
  %v48 = vld [vmem:[%s2] sm:$0x1]
  %v49 = vld [vmem:[%s2 + $0x3] sm:$0x1]
  %v50 = vlaneseq
  %v51 = vshrl.u32 %v50, 7
  %v52 = vsub.s32 0, %v51
  %v53 = vrot.slane %v48, %v52
  %54 = vmatprep.subr.mxu0 0.0
  %55 = vmatpush1.msra.mxu0 %v15
  %56 = vmatprep.subr.mxu0 0.0
  %57 = vmatpush1.msra.mxu0 %v16
  %58 = vmatprep.subr.mxu0 0.0
  %59 = vmatpush1.msra.mxu0 %v17
  %60 = vmatprep.subr.mxu0 0.0
  %61 = vmatpush1.msra.mxu0 %v18
  %62 = vmatprep.subr.mxu0 0.0
  %63 = vmatpush1.msra.mxu0 %v19
  %64 = vmatprep.subr.mxu0 0.0
  %65 = vmatpush1.msra.mxu0 %v20
  %66 = vmatprep.subr.mxu0 0.0
  %67 = vmatpush1.msra.mxu0 %v21
  %68 = vmatprep.subr.mxu0 0.0
  %69 = vmatpush1.msra.mxu0 %v22
  %70 = vmatprep.subr.mxu0 0.0
  %71 = vmatpush1.msra.mxu0 %v23
  %72 = vmatprep.subr.mxu0 0.0
  %73 = vmatpush1.msra.mxu0 %v24
  %74 = vmatprep.subr.mxu0 0.0
  %75 = vmatpush1.msra.mxu0 %v25
  %76 = vmatprep.subr.mxu0 0.0
  %77 = vmatpush1.msra.mxu0 %v26
  %78 = vmatprep.subr.mxu0 0.0
  %79 = vmatpush1.msra.mxu0 %v27
  %80 = vmatprep.subr.mxu0 0.0
  %81 = vmatpush1.msra.mxu0 %v28
  %82 = vmatprep.subr.mxu0 0.0
  %83 = vmatpush1.msra.mxu0 %v29
  %84 = vmatprep.subr.mxu0 0.0
  %85 = vmatpush1.msra.mxu0 %v30
  %86 = vmatprep.subr.mxu0 0.0
  %87 = vmatpush1.msra.mxu0 0.0
  %88 = vmatprep.subr.mxu0 0.0
  %89 = vmatpush1.msra.mxu0 0.0
  %90 = vmatprep.subr.mxu0 0.0
  %91 = vmatpush1.msra.mxu0 0.0
  %92 = vmatprep.subr.mxu0 0.0
  %93 = vmatpush1.msra.mxu0 0.0
  %94 = vmatprep.subr.mxu0 0.0
  %95 = vmatpush1.msra.mxu0 0.0
  %96 = vmatprep.subr.mxu0 0.0
  %97 = vmatpush1.msra.mxu0 0.0
  %98 = vmatprep.subr.mxu0 0.0
  %99 = vmatpush1.msra.mxu0 0.0
  %100 = vmatprep.subr.mxu0 0.0
  %101 = vmatpush1.msra.mxu0 0.0
  %102 = vmatprep.subr.mxu0 0.0
  %103 = vmatpush1.msra.mxu0 0.0
  %104 = vmatprep.subr.mxu0 0.0
  %105 = vmatpush1.msra.mxu0 0.0
  %106 = vmatprep.subr.mxu0 0.0
  %107 = vmatpush1.msra.mxu0 0.0
  %108 = vmatprep.subr.mxu0 0.0
  %109 = vmatpush1.msra.mxu0 0.0
  %110 = vmatprep.subr.mxu0 0.0
  %111 = vmatpush1.msra.mxu0 0.0
  %112 = vmatprep.subr.mxu0 0.0
  %113 = vmatpush1.msra.mxu0 0.0
  %114 = vmatprep.subr.mxu0 0.0
  %115 = vmatpush1.msra.mxu0 0.0
  %116 = vmatprep.subr.mxu0 0.0
  %117 = vmatpush1.msra.mxu0 0.0
  %118 = vmatprep.mubr.f32.mxu0 0.0
  %119 = vmatmul.mubr.f32.gmra.mrb[0].mxu0 %v14
  %v120 = vpop.f32.mrb[0].mxu0
  %v121 = vadd.f32 %v53, %v120
  %v122 = vpop.f32.mrb[0].mxu0
  %123 = vdwg.mxu0
  %v124 = vmax.f32 %v121, 0.0
  %v125 = vlaneseq
  %v126 = vshrl.u32 %v125, 7
  %v127 = vsub.s32 0, %v126
  %v128 = vrot.slane %v49, %v127
  %129 = vmatprep.subr.mxu0 0.0
  %130 = vmatpush1.msra.mxu0 %v32
  %131 = vmatprep.subr.mxu0 0.0
  %132 = vmatpush1.msra.mxu0 %v33
  %133 = vmatprep.subr.mxu0 0.0
  %134 = vmatpush1.msra.mxu0 %v34
  %135 = vmatprep.subr.mxu0 0.0
  %136 = vmatpush1.msra.mxu0 %v35
  %137 = vmatprep.subr.mxu0 0.0
  %138 = vmatpush1.msra.mxu0 %v36
  %139 = vmatprep.subr.mxu0 0.0
  %140 = vmatpush1.msra.mxu0 %v37
  %141 = vmatprep.subr.mxu0 0.0
  %142 = vmatpush1.msra.mxu0 %v38
  %143 = vmatprep.subr.mxu0 0.0
  %144 = vmatpush1.msra.mxu0 %v39
  %145 = vmatprep.subr.mxu0 0.0
  %146 = vmatpush1.msra.mxu0 %v40
  %147 = vmatprep.subr.mxu0 0.0
  %148 = vmatpush1.msra.mxu0 %v41
  %149 = vmatprep.subr.mxu0 0.0
  %150 = vmatpush1.msra.mxu0 %v42
  %151 = vmatprep.subr.mxu0 0.0
  %152 = vmatpush1.msra.mxu0 %v43
  %153 = vmatprep.subr.mxu0 0.0
  %154 = vmatpush1.msra.mxu0 %v44
  %155 = vmatprep.subr.mxu0 0.0
  %156 = vmatpush1.msra.mxu0 %v45
  %157 = vmatprep.subr.mxu0 0.0
  %158 = vmatpush1.msra.mxu0 %v46
  %159 = vmatprep.subr.mxu0 0.0
  %160 = vmatpush1.msra.mxu0 %v47
  %161 = vmatprep.subr.mxu0 0.0
  %162 = vmatpush1.msra.mxu0 0.0
  %163 = vmatprep.subr.mxu0 0.0
  %164 = vmatpush1.msra.mxu0 0.0
  %165 = vmatprep.subr.mxu0 0.0
  %166 = vmatpush1.msra.mxu0 0.0
  %167 = vmatprep.subr.mxu0 0.0
  %168 = vmatpush1.msra.mxu0 0.0
  %169 = vmatprep.subr.mxu0 0.0
  %170 = vmatpush1.msra.mxu0 0.0
  %171 = vmatprep.subr.mxu0 0.0
  %172 = vmatpush1.msra.mxu0 0.0
  %173 = vmatprep.subr.mxu0 0.0
  %174 = vmatpush1.msra.mxu0 0.0
  %175 = vmatprep.subr.mxu0 0.0
  %176 = vmatpush1.msra.mxu0 0.0
  %177 = vmatprep.subr.mxu0 0.0
  %178 = vmatpush1.msra.mxu0 0.0
  %179 = vmatprep.subr.mxu0 0.0
  %180 = vmatpush1.msra.mxu0 0.0
  %181 = vmatprep.subr.mxu0 0.0
  %182 = vmatpush1.msra.mxu0 0.0
  %183 = vmatprep.subr.mxu0 0.0
  %184 = vmatpush1.msra.mxu0 0.0
  %185 = vmatprep.subr.mxu0 0.0
  %186 = vmatpush1.msra.mxu0 0.0
  %187 = vmatprep.subr.mxu0 0.0
  %188 = vmatpush1.msra.mxu0 0.0
  %189 = vmatprep.subr.mxu0 0.0
  %190 = vmatpush1.msra.mxu0 0.0
  %191 = vmatprep.subr.mxu0 0.0
  %192 = vmatpush1.msra.mxu0 0.0
  %193 = vmatprep.mubr.f32.mxu0 0.0
  %194 = vmatmul.mubr.f32.gmra.mrb[0].mxu0 %v124
  %v195 = vpop.f32.mrb[0].mxu0
  %v196 = vadd.f32 %v128, %v195
  %v197 = vpop.f32.mrb[0].mxu0
  %198 = vdwg.mxu0
  %v199 = vadd.f32 %v196, %v14
  %v200 = vmax.f32 %v199, 0.0
  %s201 = scalar_lea.vmem %s1, 128
  %v202 = vld [vmem:[%s201] sm:$0xff]
  %v203 = vld [vmem:[%s201 + $0x8] sm:$0xff]
  %v204 = vld [vmem:[%s201 + $0x10] sm:$0xff]
  %v205 = vld [vmem:[%s201 + $0x18] sm:$0xff]
  %v206 = vld [vmem:[%s201 + $0x20] sm:$0xff]
  %v207 = vld [vmem:[%s201 + $0x28] sm:$0xff]
  %v208 = vld [vmem:[%s201 + $0x30] sm:$0xff]
  %v209 = vld [vmem:[%s201 + $0x38] sm:$0xff]
  %v210 = vld [vmem:[%s201 + $0x40] sm:$0xff]
  %v211 = vld [vmem:[%s201 + $0x48] sm:$0xff]
  %v212 = vld [vmem:[%s201 + $0x50] sm:$0xff]
  %v213 = vld [vmem:[%s201 + $0x58] sm:$0xff]
  %v214 = vld [vmem:[%s201 + $0x60] sm:$0xff]
  %v215 = vld [vmem:[%s201 + $0x68] sm:$0xff]
  %v216 = vld [vmem:[%s201 + $0x70] sm:$0xff]
  %v217 = vld [vmem:[%s201 + $0x78] sm:$0xff]
  %s218 = scalar_lea.vmem %s1, 512
  %v219 = vld [vmem:[%s218] sm:$0xff]
  %v220 = vld [vmem:[%s218 + $0x8] sm:$0xff]
  %v221 = vld [vmem:[%s218 + $0x10] sm:$0xff]
  %v222 = vld [vmem:[%s218 + $0x18] sm:$0xff]
  %v223 = vld [vmem:[%s218 + $0x20] sm:$0xff]
  %v224 = vld [vmem:[%s218 + $0x28] sm:$0xff]
  %v225 = vld [vmem:[%s218 + $0x30] sm:$0xff]
  %v226 = vld [vmem:[%s218 + $0x38] sm:$0xff]
  %v227 = vld [vmem:[%s218 + $0x40] sm:$0xff]
  %v228 = vld [vmem:[%s218 + $0x48] sm:$0xff]
  %v229 = vld [vmem:[%s218 + $0x50] sm:$0xff]
  %v230 = vld [vmem:[%s218 + $0x58] sm:$0xff]
  %v231 = vld [vmem:[%s218 + $0x60] sm:$0xff]
  %v232 = vld [vmem:[%s218 + $0x68] sm:$0xff]
  %v233 = vld [vmem:[%s218 + $0x70] sm:$0xff]
  %v234 = vld [vmem:[%s218 + $0x78] sm:$0xff]
  %v235 = vld [vmem:[%s2 + $0x1] sm:$0x1]
  %v236 = vld [vmem:[%s2 + $0x4] sm:$0x1]
  %v237 = vlaneseq
  %v238 = vshrl.u32 %v237, 7
  %v239 = vsub.s32 0, %v238
  %v240 = vrot.slane %v235, %v239
  %241 = vmatprep.subr.mxu0 0.0
  %242 = vmatpush1.msra.mxu0 %v202
  %243 = vmatprep.subr.mxu0 0.0
  %244 = vmatpush1.msra.mxu0 %v203
  %245 = vmatprep.subr.mxu0 0.0
  %246 = vmatpush1.msra.mxu0 %v204
  %247 = vmatprep.subr.mxu0 0.0
  %248 = vmatpush1.msra.mxu0 %v205
  %249 = vmatprep.subr.mxu0 0.0
  %250 = vmatpush1.msra.mxu0 %v206
  %251 = vmatprep.subr.mxu0 0.0
  %252 = vmatpush1.msra.mxu0 %v207
  %253 = vmatprep.subr.mxu0 0.0
  %254 = vmatpush1.msra.mxu0 %v208
  %255 = vmatprep.subr.mxu0 0.0
  %256 = vmatpush1.msra.mxu0 %v209
  %257 = vmatprep.subr.mxu0 0.0
  %258 = vmatpush1.msra.mxu0 %v210
  %259 = vmatprep.subr.mxu0 0.0
  %260 = vmatpush1.msra.mxu0 %v211
  %261 = vmatprep.subr.mxu0 0.0
  %262 = vmatpush1.msra.mxu0 %v212
  %263 = vmatprep.subr.mxu0 0.0
  %264 = vmatpush1.msra.mxu0 %v213
  %265 = vmatprep.subr.mxu0 0.0
  %266 = vmatpush1.msra.mxu0 %v214
  %267 = vmatprep.subr.mxu0 0.0
  %268 = vmatpush1.msra.mxu0 %v215
  %269 = vmatprep.subr.mxu0 0.0
  %270 = vmatpush1.msra.mxu0 %v216
  %271 = vmatprep.subr.mxu0 0.0
  %272 = vmatpush1.msra.mxu0 %v217
  %273 = vmatprep.subr.mxu0 0.0
  %274 = vmatpush1.msra.mxu0 0.0
  %275 = vmatprep.subr.mxu0 0.0
  %276 = vmatpush1.msra.mxu0 0.0
  %277 = vmatprep.subr.mxu0 0.0
  %278 = vmatpush1.msra.mxu0 0.0
  %279 = vmatprep.subr.mxu0 0.0
  %280 = vmatpush1.msra.mxu0 0.0
  %281 = vmatprep.subr.mxu0 0.0
  %282 = vmatpush1.msra.mxu0 0.0
  %283 = vmatprep.subr.mxu0 0.0
  %284 = vmatpush1.msra.mxu0 0.0
  %285 = vmatprep.subr.mxu0 0.0
  %286 = vmatpush1.msra.mxu0 0.0
  %287 = vmatprep.subr.mxu0 0.0
  %288 = vmatpush1.msra.mxu0 0.0
  %289 = vmatprep.subr.mxu0 0.0
  %290 = vmatpush1.msra.mxu0 0.0
  %291 = vmatprep.subr.mxu0 0.0
  %292 = vmatpush1.msra.mxu0 0.0
  %293 = vmatprep.subr.mxu0 0.0
  %294 = vmatpush1.msra.mxu0 0.0
  %295 = vmatprep.subr.mxu0 0.0
  %296 = vmatpush1.msra.mxu0 0.0
  %297 = vmatprep.subr.mxu0 0.0
  %298 = vmatpush1.msra.mxu0 0.0
  %299 = vmatprep.subr.mxu0 0.0
  %300 = vmatpush1.msra.mxu0 0.0
  %301 = vmatprep.subr.mxu0 0.0
  %302 = vmatpush1.msra.mxu0 0.0
  %303 = vmatprep.subr.mxu0 0.0
  %304 = vmatpush1.msra.mxu0 0.0
  %305 = vmatprep.mubr.f32.mxu0 0.0
  %306 = vmatmul.mubr.f32.gmra.mrb[0].mxu0 %v200
  %v307 = vpop.f32.mrb[0].mxu0
  %v308 = vadd.f32 %v240, %v307
  %v309 = vpop.f32.mrb[0].mxu0
  %310 = vdwg.mxu0
  %v311 = vmax.f32 %v308, 0.0
  %v312 = vlaneseq
  %v313 = vshrl.u32 %v312, 7
  %v314 = vsub.s32 0, %v313
  %v315 = vrot.slane %v236, %v314
  %316 = vmatprep.subr.mxu0 0.0
  %317 = vmatpush1.msra.mxu0 %v219
  %318 = vmatprep.subr.mxu0 0.0
  %319 = vmatpush1.msra.mxu0 %v220
  %320 = vmatprep.subr.mxu0 0.0
  %321 = vmatpush1.msra.mxu0 %v221
  %322 = vmatprep.subr.mxu0 0.0
  %323 = vmatpush1.msra.mxu0 %v222
  %324 = vmatprep.subr.mxu0 0.0
  %325 = vmatpush1.msra.mxu0 %v223
  %326 = vmatprep.subr.mxu0 0.0
  %327 = vmatpush1.msra.mxu0 %v224
  %328 = vmatprep.subr.mxu0 0.0
  %329 = vmatpush1.msra.mxu0 %v225
  %330 = vmatprep.subr.mxu0 0.0
  %331 = vmatpush1.msra.mxu0 %v226
  %332 = vmatprep.subr.mxu0 0.0
  %333 = vmatpush1.msra.mxu0 %v227
  %334 = vmatprep.subr.mxu0 0.0
  %335 = vmatpush1.msra.mxu0 %v228
  %336 = vmatprep.subr.mxu0 0.0
  %337 = vmatpush1.msra.mxu0 %v229
  %338 = vmatprep.subr.mxu0 0.0
  %339 = vmatpush1.msra.mxu0 %v230
  %340 = vmatprep.subr.mxu0 0.0
  %341 = vmatpush1.msra.mxu0 %v231
  %342 = vmatprep.subr.mxu0 0.0
  %343 = vmatpush1.msra.mxu0 %v232
  %344 = vmatprep.subr.mxu0 0.0
  %345 = vmatpush1.msra.mxu0 %v233
  %346 = vmatprep.subr.mxu0 0.0
  %347 = vmatpush1.msra.mxu0 %v234
  %348 = vmatprep.subr.mxu0 0.0
  %349 = vmatpush1.msra.mxu0 0.0
  %350 = vmatprep.subr.mxu0 0.0
  %351 = vmatpush1.msra.mxu0 0.0
  %352 = vmatprep.subr.mxu0 0.0
  %353 = vmatpush1.msra.mxu0 0.0
  %354 = vmatprep.subr.mxu0 0.0
  %355 = vmatpush1.msra.mxu0 0.0
  %356 = vmatprep.subr.mxu0 0.0
  %357 = vmatpush1.msra.mxu0 0.0
  %358 = vmatprep.subr.mxu0 0.0
  %359 = vmatpush1.msra.mxu0 0.0
  %360 = vmatprep.subr.mxu0 0.0
  %361 = vmatpush1.msra.mxu0 0.0
  %362 = vmatprep.subr.mxu0 0.0
  %363 = vmatpush1.msra.mxu0 0.0
  %364 = vmatprep.subr.mxu0 0.0
  %365 = vmatpush1.msra.mxu0 0.0
  %366 = vmatprep.subr.mxu0 0.0
  %367 = vmatpush1.msra.mxu0 0.0
  %368 = vmatprep.subr.mxu0 0.0
  %369 = vmatpush1.msra.mxu0 0.0
  %370 = vmatprep.subr.mxu0 0.0
  %371 = vmatpush1.msra.mxu0 0.0
  %372 = vmatprep.subr.mxu0 0.0
  %373 = vmatpush1.msra.mxu0 0.0
  %374 = vmatprep.subr.mxu0 0.0
  %375 = vmatpush1.msra.mxu0 0.0
  %376 = vmatprep.subr.mxu0 0.0
  %377 = vmatpush1.msra.mxu0 0.0
  %378 = vmatprep.subr.mxu0 0.0
  %379 = vmatpush1.msra.mxu0 0.0
  %380 = vmatprep.mubr.f32.mxu0 0.0
  %381 = vmatmul.mubr.f32.gmra.mrb[0].mxu0 %v311
  %v382 = vpop.f32.mrb[0].mxu0
  %v383 = vadd.f32 %v315, %v382
  %v384 = vpop.f32.mrb[0].mxu0
  %385 = vdwg.mxu0
  %v386 = vadd.f32 %v383, %v200
  %v387 = vmax.f32 %v386, 0.0
  %s388 = scalar_lea.vmem %s1, 256
  %v389 = vld [vmem:[%s388] sm:$0xff]
  %v390 = vld [vmem:[%s388 + $0x8] sm:$0xff]
  %v391 = vld [vmem:[%s388 + $0x10] sm:$0xff]
  %v392 = vld [vmem:[%s388 + $0x18] sm:$0xff]
  %v393 = vld [vmem:[%s388 + $0x20] sm:$0xff]
  %v394 = vld [vmem:[%s388 + $0x28] sm:$0xff]
  %v395 = vld [vmem:[%s388 + $0x30] sm:$0xff]
  %v396 = vld [vmem:[%s388 + $0x38] sm:$0xff]
  %v397 = vld [vmem:[%s388 + $0x40] sm:$0xff]
  %v398 = vld [vmem:[%s388 + $0x48] sm:$0xff]
  %v399 = vld [vmem:[%s388 + $0x50] sm:$0xff]
  %v400 = vld [vmem:[%s388 + $0x58] sm:$0xff]
  %v401 = vld [vmem:[%s388 + $0x60] sm:$0xff]
  %v402 = vld [vmem:[%s388 + $0x68] sm:$0xff]
  %v403 = vld [vmem:[%s388 + $0x70] sm:$0xff]
  %v404 = vld [vmem:[%s388 + $0x78] sm:$0xff]
  %s405 = scalar_lea.vmem %s1, 640
  %v406 = vld [vmem:[%s405] sm:$0xff]
  %v407 = vld [vmem:[%s405 + $0x8] sm:$0xff]
  %v408 = vld [vmem:[%s405 + $0x10] sm:$0xff]
  %v409 = vld [vmem:[%s405 + $0x18] sm:$0xff]
  %v410 = vld [vmem:[%s405 + $0x20] sm:$0xff]
  %v411 = vld [vmem:[%s405 + $0x28] sm:$0xff]
  %v412 = vld [vmem:[%s405 + $0x30] sm:$0xff]
  %v413 = vld [vmem:[%s405 + $0x38] sm:$0xff]
  %v414 = vld [vmem:[%s405 + $0x40] sm:$0xff]
  %v415 = vld [vmem:[%s405 + $0x48] sm:$0xff]
  %v416 = vld [vmem:[%s405 + $0x50] sm:$0xff]
  %v417 = vld [vmem:[%s405 + $0x58] sm:$0xff]
  %v418 = vld [vmem:[%s405 + $0x60] sm:$0xff]
  %v419 = vld [vmem:[%s405 + $0x68] sm:$0xff]
  %v420 = vld [vmem:[%s405 + $0x70] sm:$0xff]
  %v421 = vld [vmem:[%s405 + $0x78] sm:$0xff]
  %v422 = vld [vmem:[%s2 + $0x2] sm:$0x1]
  %v423 = vld [vmem:[%s2 + $0x5] sm:$0x1]
  %v424 = vlaneseq
  %v425 = vshrl.u32 %v424, 7
  %v426 = vsub.s32 0, %v425
  %v427 = vrot.slane %v422, %v426
  %428 = vmatprep.subr.mxu0 0.0
  %429 = vmatpush1.msra.mxu0 %v389
  %430 = vmatprep.subr.mxu0 0.0
  %431 = vmatpush1.msra.mxu0 %v390
  %432 = vmatprep.subr.mxu0 0.0
  %433 = vmatpush1.msra.mxu0 %v391
  %434 = vmatprep.subr.mxu0 0.0
  %435 = vmatpush1.msra.mxu0 %v392
  %436 = vmatprep.subr.mxu0 0.0
  %437 = vmatpush1.msra.mxu0 %v393
  %438 = vmatprep.subr.mxu0 0.0
  %439 = vmatpush1.msra.mxu0 %v394
  %440 = vmatprep.subr.mxu0 0.0
  %441 = vmatpush1.msra.mxu0 %v395
  %442 = vmatprep.subr.mxu0 0.0
  %443 = vmatpush1.msra.mxu0 %v396
  %444 = vmatprep.subr.mxu0 0.0
  %445 = vmatpush1.msra.mxu0 %v397
  %446 = vmatprep.subr.mxu0 0.0
  %447 = vmatpush1.msra.mxu0 %v398
  %448 = vmatprep.subr.mxu0 0.0
  %449 = vmatpush1.msra.mxu0 %v399
  %450 = vmatprep.subr.mxu0 0.0
  %451 = vmatpush1.msra.mxu0 %v400
  %452 = vmatprep.subr.mxu0 0.0
  %453 = vmatpush1.msra.mxu0 %v401
  %454 = vmatprep.subr.mxu0 0.0
  %455 = vmatpush1.msra.mxu0 %v402
  %456 = vmatprep.subr.mxu0 0.0
  %457 = vmatpush1.msra.mxu0 %v403
  %458 = vmatprep.subr.mxu0 0.0
  %459 = vmatpush1.msra.mxu0 %v404
  %460 = vmatprep.subr.mxu0 0.0
  %461 = vmatpush1.msra.mxu0 0.0
  %462 = vmatprep.subr.mxu0 0.0
  %463 = vmatpush1.msra.mxu0 0.0
  %464 = vmatprep.subr.mxu0 0.0
  %465 = vmatpush1.msra.mxu0 0.0
  %466 = vmatprep.subr.mxu0 0.0
  %467 = vmatpush1.msra.mxu0 0.0
  %468 = vmatprep.subr.mxu0 0.0
  %469 = vmatpush1.msra.mxu0 0.0
  %470 = vmatprep.subr.mxu0 0.0
  %471 = vmatpush1.msra.mxu0 0.0
  %472 = vmatprep.subr.mxu0 0.0
  %473 = vmatpush1.msra.mxu0 0.0
  %474 = vmatprep.subr.mxu0 0.0
  %475 = vmatpush1.msra.mxu0 0.0
  %476 = vmatprep.subr.mxu0 0.0
  %477 = vmatpush1.msra.mxu0 0.0
  %478 = vmatprep.subr.mxu0 0.0
  %479 = vmatpush1.msra.mxu0 0.0
  %480 = vmatprep.subr.mxu0 0.0
  %481 = vmatpush1.msra.mxu0 0.0
  %482 = vmatprep.subr.mxu0 0.0
  %483 = vmatpush1.msra.mxu0 0.0
  %484 = vmatprep.subr.mxu0 0.0
  %485 = vmatpush1.msra.mxu0 0.0
  %486 = vmatprep.subr.mxu0 0.0
  %487 = vmatpush1.msra.mxu0 0.0
  %488 = vmatprep.subr.mxu0 0.0
  %489 = vmatpush1.msra.mxu0 0.0
  %490 = vmatprep.subr.mxu0 0.0
  %491 = vmatpush1.msra.mxu0 0.0
  %492 = vmatprep.mubr.f32.mxu0 0.0
  %493 = vmatmul.mubr.f32.gmra.mrb[0].mxu0 %v387
  %v494 = vpop.f32.mrb[0].mxu0
  %v495 = vadd.f32 %v427, %v494
  %v496 = vpop.f32.mrb[0].mxu0
  %497 = vdwg.mxu0
  %v498 = vmax.f32 %v495, 0.0
  %v499 = vlaneseq
  %v500 = vshrl.u32 %v499, 7
  %v501 = vsub.s32 0, %v500
  %v502 = vrot.slane %v423, %v501
  %503 = vmatprep.subr.mxu0 0.0
  %504 = vmatpush1.msra.mxu0 %v406
  %505 = vmatprep.subr.mxu0 0.0
  %506 = vmatpush1.msra.mxu0 %v407
  %507 = vmatprep.subr.mxu0 0.0
  %508 = vmatpush1.msra.mxu0 %v408
  %509 = vmatprep.subr.mxu0 0.0
  %510 = vmatpush1.msra.mxu0 %v409
  %511 = vmatprep.subr.mxu0 0.0
  %512 = vmatpush1.msra.mxu0 %v410
  %513 = vmatprep.subr.mxu0 0.0
  %514 = vmatpush1.msra.mxu0 %v411
  %515 = vmatprep.subr.mxu0 0.0
  %516 = vmatpush1.msra.mxu0 %v412
  %517 = vmatprep.subr.mxu0 0.0
  %518 = vmatpush1.msra.mxu0 %v413
  %519 = vmatprep.subr.mxu0 0.0
  %520 = vmatpush1.msra.mxu0 %v414
  %521 = vmatprep.subr.mxu0 0.0
  %522 = vmatpush1.msra.mxu0 %v415
  %523 = vmatprep.subr.mxu0 0.0
  %524 = vmatpush1.msra.mxu0 %v416
  %525 = vmatprep.subr.mxu0 0.0
  %526 = vmatpush1.msra.mxu0 %v417
  %527 = vmatprep.subr.mxu0 0.0
  %528 = vmatpush1.msra.mxu0 %v418
  %529 = vmatprep.subr.mxu0 0.0
  %530 = vmatpush1.msra.mxu0 %v419
  %531 = vmatprep.subr.mxu0 0.0
  %532 = vmatpush1.msra.mxu0 %v420
  %533 = vmatprep.subr.mxu0 0.0
  %534 = vmatpush1.msra.mxu0 %v421
  %535 = vmatprep.subr.mxu0 0.0
  %536 = vmatpush1.msra.mxu0 0.0
  %537 = vmatprep.subr.mxu0 0.0
  %538 = vmatpush1.msra.mxu0 0.0
  %539 = vmatprep.subr.mxu0 0.0
  %540 = vmatpush1.msra.mxu0 0.0
  %541 = vmatprep.subr.mxu0 0.0
  %542 = vmatpush1.msra.mxu0 0.0
  %543 = vmatprep.subr.mxu0 0.0
  %544 = vmatpush1.msra.mxu0 0.0
  %545 = vmatprep.subr.mxu0 0.0
  %546 = vmatpush1.msra.mxu0 0.0
  %547 = vmatprep.subr.mxu0 0.0
  %548 = vmatpush1.msra.mxu0 0.0
  %549 = vmatprep.subr.mxu0 0.0
  %550 = vmatpush1.msra.mxu0 0.0
  %551 = vmatprep.subr.mxu0 0.0
  %552 = vmatpush1.msra.mxu0 0.0
  %553 = vmatprep.subr.mxu0 0.0
  %554 = vmatpush1.msra.mxu0 0.0
  %555 = vmatprep.subr.mxu0 0.0
  %556 = vmatpush1.msra.mxu0 0.0
  %557 = vmatprep.subr.mxu0 0.0
  %558 = vmatpush1.msra.mxu0 0.0
  %559 = vmatprep.subr.mxu0 0.0
  %560 = vmatpush1.msra.mxu0 0.0
  %561 = vmatprep.subr.mxu0 0.0
  %562 = vmatpush1.msra.mxu0 0.0
  %563 = vmatprep.subr.mxu0 0.0
  %564 = vmatpush1.msra.mxu0 0.0
  %565 = vmatprep.subr.mxu0 0.0
  %566 = vmatpush1.msra.mxu0 0.0
  %567 = vmatprep.mubr.f32.mxu0 0.0
  %568 = vmatmul.mubr.f32.gmra.mrb[0].mxu0 %v498
  %v569 = vpop.f32.mrb[0].mxu0
  %v570 = vadd.f32 %v502, %v569
  %v571 = vpop.f32.mrb[0].mxu0
  %572 = vdwg.mxu0
  %v573 = vadd.f32 %v570, %v387
  %v574 = vmax.f32 %v573, 0.0
  %v575 = vld [vmem:[%s2 + $0x6] sm:$0x1]
  %v576 = vld [vmem:[%s2 + $0x7] sm:$0x1]
  %v577 = vlaneseq
  %v578 = vshrl.u32 %v577, 7
  %v579 = vsub.s32 0, %v578
  %v580 = vrot.slane %v575, %v579
  %v581 = vmul.f32 %v574, %v580
  %582 = vadd.xlane.f32.xlu0 %v581
  %v583 = vpop.xlane.xlu0 %582
  %v584 = vlaneseq
  %v585 = vshrl.u32 %v584, 7
  %v586 = vsub.s32 0, %v585
  %v587 = vrot.slane %v576, %v586
  %v588 = vadd.f32 %v583, %v587
  %v589 = vsub.f32 0.0, %v588
  %v590 = vmul.f32 %v589, 1.442695
  %v591 = vpow.pop %v590
  %v592 = vadd.f32 %v591, 1.0
  %v593 = vrcp.pop %v592
  %vm594 = vcmask 7168
  %595 = vst.msk [vmem:[%s3] sm:$0xff] %vm594, %v593
  // Predicated region
  $region14: #{deep_crossing_forward.1} parent=0 // pred_check
    _
  $region15: #{deep_crossing_forward.1} parent=0 // pred_check_branch
    %597 = sbr.rel (0) target = $region17
  $region16: #{deep_crossing_forward.1} parent=0 // pred_region
    _
  $region17: #{deep_crossing_forward.1} parent=0 // pred_fallthru
    _
  // Predicated region
  $region18: #{deep_crossing_forward.1} parent=0 // pred_check
    _
  $region19: #{deep_crossing_forward.1} parent=0 // pred_check_branch
    %599 = sbr.rel (0) target = $region21
  $region20: #{deep_crossing_forward.1} parent=0 // pred_region
    _
  $region21: #{deep_crossing_forward.1} parent=0 // pred_fallthru
    _

</llo_original>
